<compile_context>
chip_gen: v6e
topology: v6e:2x2x1
jax: 0.10.0
libtpu: 0.0.40
codegen_flags: <defaults>
</compile_context>

<pallas_src>
import jax
import jax.numpy as jnp
from jax.experimental import pallas as pl
from jax.experimental.pallas import tpu as pltpu


# ----------------------------------------------------------------------------
# Fused kernel: backbone 1x1-conv + ReLU + global-average-pool + linear head
# ----------------------------------------------------------------------------
def _make_fused_kernel(inv_spatial):
    """inv_spatial = 1 / (H*W), folded in at finalize on the tiny accumulator."""

    def kernel(x_ref, wt_ref, bc_ref, fcw_ref, fcb_ref, o_ref, acc_ref):
        # x_ref:   (1, Cin, TS)   spatial tile of one batch element (NCHW-native)
        # wt_ref:  (Coutp, Cin)   conv weight, transposed + channel-padded
        # bc_ref:  (Coutp, 1)     conv bias
        # fcw_ref: (Coutp, Kp)    linear weight (padded)
        # fcb_ref: (1, Kp)        linear bias (padded)
        # o_ref:   (1, 1, Kp)     logits row for this batch element
        # acc_ref: (Coutp, 1)     f32 pool accumulator (persists across s-steps)
        s = pl.program_id(1)

        @pl.when(s == 0)
        def _init():
            acc_ref[...] = jnp.zeros_like(acc_ref)

        # Backbone stand-in: 1x1 conv as a matmul over Cin, + bias, ReLU (MXU + VPU).
        x = x_ref[0]                                                      # (Cin, TS)
        y = jnp.dot(wt_ref[...], x, preferred_element_type=jnp.float32)  # (Coutp, TS)
        y = jnp.maximum(y + bc_ref[...], 0.0)

        # Partial global average pool: channel sums for this spatial tile (XLU).
        acc_ref[...] += jnp.sum(y, axis=1, keepdims=True)                 # (Coutp, 1)

        @pl.when(s == pl.num_programs(1) - 1)
        def _finalize():
            pooled = acc_ref[...] * inv_spatial                           # mean, (Coutp, 1)
            # Linear head: (1, Coutp) @ (Coutp, Kp) done as broadcast-mul +
            # sublane reduce (tiny; avoids transposing `pooled`).
            logits = jnp.sum(pooled * fcw_ref[...], axis=0, keepdims=True)
            o_ref[0] = (logits + fcb_ref[...]).astype(o_ref.dtype)        # (1, Kp)

    return kernel


# ----------------------------------------------------------------------------
# Wrapper
# ----------------------------------------------------------------------------
def _round_up(v, m):
    return ((v + m - 1) // m) * m


def _choose_spatial_tile(S, Cin, Coutp):
    # Per-lane-column VMEM cost: double-buffered x tile (2 * Cin * 4 B) plus the
    # f32 (Coutp, TS) feature intermediate (Coutp * 4 B). Budget ~10 MiB so we
    # stay well inside the 32 MiB scoped VMEM limit with params + output slack.
    per_col_bytes = 4 * (2 * Cin + Coutp)
    budget_bytes = 10 * 1024 * 1024
    max_ts = (budget_bytes // per_col_bytes) // 128 * 128
    max_ts = max(128, min(max_ts, 16384))   # keep tiles lane-aligned & reasonable
    if S <= max_ts:
        return S
    if S % 128 == 0:
        ts = max_ts
        while ts > 128 and S % ts != 0:
            ts -= 128
        return ts
    # TODO(synk): irregular spatial extents larger than the VMEM budget are taken
    # as one full block; pad+mask tiling would be needed to split them.
    return S


def classifier_forward(x_nchw, params, *, spatial_tile=None):
    N, Cin, H, W = x_nchw.shape
    S = H * W
    Cout = params["conv_w"].shape[1]
    K = params["fc_w"].shape[1]

    Coutp = _round_up(Cout, 8)    # sublane-dense (Cout is the sublane axis here)
    Kp = _round_up(K, 128)        # lane-dense output row -> unmasked vector stores

    TS = spatial_tile if spatial_tile is not None else _choose_spatial_tile(S, Cin, Coutp)
    assert S % TS == 0, f"spatial tile {TS} must divide H*W={S}"
    assert TS == S or TS % 128 == 0, "spatial tile must be lane-aligned or full"

    # NCHW kept native: pure reshape, no transpose pass over HBM.
    x3 = x_nchw.reshape(N, Cin, S).astype(jnp.float32)

    # Pad / transpose the tiny parameter tensors once (negligible).
    wt = jnp.zeros((Coutp, Cin), jnp.float32).at[:Cout, :].set(params["conv_w"].T)
    bc = jnp.zeros((Coutp, 1), jnp.float32).at[:Cout, 0].set(params["conv_b"].reshape(-1))
    fcw = jnp.zeros((Coutp, Kp), jnp.float32).at[:Cout, :K].set(params["fc_w"])
    fcb = jnp.zeros((1, Kp), jnp.float32).at[0, :K].set(params["fc_b"].reshape(-1))

    kernel = _make_fused_kernel(1.0 / float(S))

    flops = 2 * N * S * Cin * Cout + 2 * N * S * Cout + 2 * N * Cout * K
    bytes_accessed = (x3.size + wt.size + bc.size + fcw.size + fcb.size + N * Kp) * 4

    out = pl.pallas_call(
        kernel,
        out_shape=jax.ShapeDtypeStruct((N, 1, Kp), jnp.float32),
        grid_spec=pltpu.PrefetchScalarGridSpec(
            num_scalar_prefetch=0,
            grid=(N, S // TS),
            in_specs=[
                pl.BlockSpec((1, Cin, TS), lambda n, s: (n, 0, s)),   # x tile
                pl.BlockSpec((Coutp, Cin), lambda n, s: (0, 0)),      # conv W^T
                pl.BlockSpec((Coutp, 1), lambda n, s: (0, 0)),        # conv bias
                pl.BlockSpec((Coutp, Kp), lambda n, s: (0, 0)),       # fc W
                pl.BlockSpec((1, Kp), lambda n, s: (0, 0)),           # fc bias
            ],
            out_specs=pl.BlockSpec((1, 1, Kp), lambda n, s: (n, 0, 0)),
            scratch_shapes=[pltpu.VMEM((Coutp, 1), jnp.float32)],
        ),
        compiler_params=pltpu.CompilerParams(
            dimension_semantics=("parallel", "arbitrary"),
            vmem_limit_bytes=32 * 1024 * 1024,
        ),
        cost_estimate=pl.CostEstimate(
            flops=flops, transcendentals=0, bytes_accessed=bytes_accessed),
    )(x3, wt, bc, fcw, fcb)

    return out[:, 0, :K]


# ----------------------------------------------------------------------------
# Reference (pure JAX) for correctness checking
# ----------------------------------------------------------------------------
def classifier_forward_ref(x_nchw, params):
    N, Cin, H, W = x_nchw.shape
    x_flat = jnp.transpose(x_nchw, (0, 2, 3, 1)).reshape(N * H * W, Cin)
    feats = jnp.maximum(x_flat @ params["conv_w"] + params["conv_b"], 0.0)
    feats = feats.reshape(N, H * W, -1)
    pooled = jnp.mean(feats, axis=1)              # AdaptiveAvgPool2d(1) + Flatten
    return pooled @ params["fc_w"] + params["fc_b"]


# ----------------------------------------------------------------------------
if __name__ == "__main__":
    N, Cin, H, W = 2, 4, 16, 16          # input image batch (NCHW)
    Cout = 32                            # backbone.output_channels()[-1]
    K = 8                                # class_count

    key = jax.random.PRNGKey(0)
    kx, kw1, kb1, kw2, kb2 = jax.random.split(key, 5)

    x = jax.random.normal(kx, (N, Cin, H, W), dtype=jnp.float32)

    params = {
        "conv_w": jax.random.normal(kw1, (Cin, Cout), dtype=jnp.float32) * 0.1,
        "conv_b": jax.random.normal(kb1, (1, Cout), dtype=jnp.float32) * 0.1,
        "fc_w":   jax.random.normal(kw2, (Cout, K), dtype=jnp.float32) * 0.1,
        "fc_b":   jax.random.normal(kb2, (1, K), dtype=jnp.float32) * 0.1,
    }

    # spatial_tile=128 forces a 2-step spatial reduction so the accumulator
    # init / accumulate / finalize path is exercised even at this small size.
    out = jax.block_until_ready(classifier_forward(x, params, spatial_tile=128))
    ref = jax.block_until_ready(classifier_forward_ref(x, params))

    assert out.shape == (N, K), out.shape
    assert jnp.allclose(out, ref, atol=1e-4, rtol=1e-4), "mismatch vs reference"

    # Also exercise the auto-chosen (full-spatial) tile path.
    out2 = jax.block_until_ready(classifier_forward(x, params))
    assert jnp.allclose(out2, ref, atol=1e-4, rtol=1e-4), "mismatch vs reference (auto tile)"

    print("KERNEL_OK")
</pallas_src>

<mosaic_0001>
module attributes {stable_mosaic.version = 11 : i64} {
  func.func @kernel(%arg0: i32, %arg1: i32, %arg2: memref<1x4x128xf32, #tpu.memory_space<vmem>>, %arg3: memref<32x4xf32, #tpu.memory_space<vmem>>, %arg4: memref<32x1xf32, #tpu.memory_space<vmem>>, %arg5: memref<32x128xf32, #tpu.memory_space<vmem>>, %arg6: memref<1x128xf32, #tpu.memory_space<vmem>>, %arg7: memref<1x1x128xf32, #tpu.memory_space<vmem>>, %arg8: memref<32x1xf32, #tpu.memory_space<vmem>>) attributes {dimension_semantics = [#tpu.dimension_semantics<parallel>, #tpu.dimension_semantics<arbitrary>], iteration_bounds = array<i64: 2, 2>, scalar_prefetch = 0 : i64, scratch_operands = 1 : i64, tpu.core_type = #tpu.core_type<tc>, window_params = [{transform_indices = @transform_0, window_bounds = array<i64: 1, 4, 128>}, {pipeline_mode = #tpu.pipeline_mode<synchronous>, transform_indices = @transform_1, window_bounds = array<i64: 32, 4>}, {pipeline_mode = #tpu.pipeline_mode<synchronous>, transform_indices = @transform_2, window_bounds = array<i64: 32, 1>}, {pipeline_mode = #tpu.pipeline_mode<synchronous>, transform_indices = @transform_3, window_bounds = array<i64: 32, 128>}, {pipeline_mode = #tpu.pipeline_mode<synchronous>, transform_indices = @transform_4, window_bounds = array<i64: 1, 128>}, {transform_indices = @transform_5, window_bounds = array<i64: 1, 1, 128>}]} {
    %c0_i32 = arith.constant 0 : i32
    %0 = arith.cmpi eq, %arg1, %c0_i32 : i32
    %1 = arith.extui %0 : i1 to i32
    %c0_i32_0 = arith.constant 0 : i32
    %2 = arith.cmpi ne, %1, %c0_i32_0 : i32
    scf.if %2 {
      %cst_14 = arith.constant 0.000000e+00 : f32
      %20 = vector.broadcast %cst_14 : f32 to vector<32x1xf32>
      %c0_15 = arith.constant 0 : index
      %c0_16 = arith.constant 0 : index
      %21 = vector.load %arg8[%c0_15, %c0_16] : memref<32x1xf32, #tpu.memory_space<vmem>>, vector<32x1xf32>
      tpu.vector_store %arg8[%c0_15, %c0_16], %20 {strides = array<i32>} : memref<32x1xf32, #tpu.memory_space<vmem>>, vector<32x1xf32>,
    } else {
    }
    %c0 = arith.constant 0 : index
    %c0_1 = arith.constant 0 : index
    %c0_2 = arith.constant 0 : index
    %3 = vector.load %arg2[%c0, %c0_1, %c0_2] : memref<1x4x128xf32, #tpu.memory_space<vmem>>, vector<1x4x128xf32>
    %4 = vector.shape_cast %3 : vector<1x4x128xf32> to vector<4x128xf32>
    %c0_3 = arith.constant 0 : index
    %c0_4 = arith.constant 0 : index
    %5 = vector.load %arg3[%c0_3, %c0_4] : memref<32x4xf32, #tpu.memory_space<vmem>>, vector<32x4xf32>
    %cst = arith.constant dense<0.000000e+00> : vector<32x128xf32>
    %6 = tpu.matmul %5, %4, %cst {dimension_numbers = #tpu.dot_dimension_numbers<[1], [0], [0], [1], [0, 0, 1, 1], [], []>} : vector<32x4xf32>, vector<4x128xf32>, vector<32x128xf32> -> vector<32x128xf32>
    %c0_5 = arith.constant 0 : index
    %c0_6 = arith.constant 0 : index
    %7 = vector.load %arg4[%c0_5, %c0_6] : memref<32x1xf32, #tpu.memory_space<vmem>>, vector<32x1xf32>
    %8 = vector.broadcast %7 : vector<32x1xf32> to vector<32x128xf32>
    %9 = arith.addf %6, %8 : vector<32x128xf32>
    %cst_7 = arith.constant 0.000000e+00 : f32
    %10 = vector.broadcast %cst_7 : f32 to vector<32x128xf32>
    %11 = arith.maximumf %9, %10 : vector<32x128xf32>
    %c0_8 = arith.constant 0 : index
    %c0_9 = arith.constant 0 : index
    %12 = vector.load %arg8[%c0_8, %c0_9] : memref<32x1xf32, #tpu.memory_space<vmem>>, vector<32x1xf32>
    %cst_10 = arith.constant dense<0.000000e+00> : vector<32xf32>
    %13 = vector.multi_reduction <add>, %11, %cst_10 [1] : vector<32x128xf32> to vector<32xf32>
    %14 = vector.shape_cast %13 : vector<32xf32> to vector<32x1xf32>
    %15 = arith.addf %12, %14 : vector<32x1xf32>
    %c0_11 = arith.constant 0 : index
    %c0_12 = arith.constant 0 : index
    %16 = vector.load %arg8[%c0_11, %c0_12] : memref<32x1xf32, #tpu.memory_space<vmem>>, vector<32x1xf32>
    tpu.vector_store %arg8[%c0_11, %c0_12], %15 {strides = array<i32>} : memref<32x1xf32, #tpu.memory_space<vmem>>, vector<32x1xf32>,
    %c1_i32 = arith.constant 1 : i32
    %17 = arith.cmpi eq, %arg1, %c1_i32 : i32
    %18 = arith.extui %17 : i1 to i32
    %c0_i32_13 = arith.constant 0 : i32
    %19 = arith.cmpi ne, %18, %c0_i32_13 : i32
    scf.if %19 {
      %c0_14 = arith.constant 0 : index
      %c0_15 = arith.constant 0 : index
      %20 = vector.load %arg8[%c0_14, %c0_15] : memref<32x1xf32, #tpu.memory_space<vmem>>, vector<32x1xf32>
      %cst_16 = arith.constant 3.906250e-03 : f32
      %21 = vector.broadcast %cst_16 : f32 to vector<32x1xf32>
      %22 = arith.mulf %20, %21 : vector<32x1xf32>
      %c0_17 = arith.constant 0 : index
      %c0_18 = arith.constant 0 : index
      %23 = vector.load %arg5[%c0_17, %c0_18] : memref<32x128xf32, #tpu.memory_space<vmem>>, vector<32x128xf32>
      %24 = vector.broadcast %22 : vector<32x1xf32> to vector<32x128xf32>
      %25 = arith.mulf %24, %23 : vector<32x128xf32>
      %cst_19 = arith.constant dense<0.000000e+00> : vector<128xf32>
      %26 = vector.multi_reduction <add>, %25, %cst_19 [0] : vector<32x128xf32> to vector<128xf32>
      %27 = vector.shape_cast %26 : vector<128xf32> to vector<1x128xf32>
      %c0_20 = arith.constant 0 : index
      %c0_21 = arith.constant 0 : index
      %28 = vector.load %arg6[%c0_20, %c0_21] : memref<1x128xf32, #tpu.memory_space<vmem>>, vector<1x128xf32>
      %29 = arith.addf %27, %28 : vector<1x128xf32>
      %c0_22 = arith.constant 0 : index
      %c0_23 = arith.constant 0 : index
      %c0_24 = arith.constant 0 : index
      %30 = vector.load %arg7[%c0_22, %c0_23, %c0_24] : memref<1x1x128xf32, #tpu.memory_space<vmem>>, vector<1x1x128xf32>
      %31 = vector.shape_cast %30 : vector<1x1x128xf32> to vector<1x128xf32>
      %32 = vector.shape_cast %29 : vector<1x128xf32> to vector<1x1x128xf32>
      tpu.vector_store %arg7[%c0_22, %c0_23, %c0_24], %32 {strides = array<i32>} : memref<1x1x128xf32, #tpu.memory_space<vmem>>, vector<1x1x128xf32>,
    } else {
    }
    return
  }
  func.func @transform_0(%arg0: i32, %arg1: i32) -> (i32, i32, i32) {
    %c0_i32 = arith.constant 0 : i32
    %c0_i32_0 = arith.constant 0 : i32
    return %arg0, %c0_i32, %arg1 : i32, i32, i32
  }
  func.func @transform_1(%arg0: i32, %arg1: i32) -> (i32, i32) {
    %c0_i32 = arith.constant 0 : i32
    %c0_i32_0 = arith.constant 0 : i32
    %c0_i32_1 = arith.constant 0 : i32
    return %c0_i32, %c0_i32_0 : i32, i32
  }
  func.func @transform_2(%arg0: i32, %arg1: i32) -> (i32, i32) {
    %c0_i32 = arith.constant 0 : i32
    %c0_i32_0 = arith.constant 0 : i32
    %c0_i32_1 = arith.constant 0 : i32
    return %c0_i32, %c0_i32_0 : i32, i32
  }
  func.func @transform_3(%arg0: i32, %arg1: i32) -> (i32, i32) {
    %c0_i32 = arith.constant 0 : i32
    %c0_i32_0 = arith.constant 0 : i32
    %c0_i32_1 = arith.constant 0 : i32
    return %c0_i32, %c0_i32_0 : i32, i32
  }
  func.func @transform_4(%arg0: i32, %arg1: i32) -> (i32, i32) {
    %c0_i32 = arith.constant 0 : i32
    %c0_i32_0 = arith.constant 0 : i32
    %c0_i32_1 = arith.constant 0 : i32
    return %c0_i32, %c0_i32_0 : i32, i32
  }
  func.func @transform_5(%arg0: i32, %arg1: i32) -> (i32, i32, i32) {
    %c0_i32 = arith.constant 0 : i32
    %c0_i32_0 = arith.constant 0 : i32
    %c0_i32_1 = arith.constant 0 : i32
    return %arg0, %c0_i32, %c0_i32_0 : i32, i32, i32
  }
}

</mosaic_0001>

<llo_original>
// kernel: tpu_custom_call.1
$region0: #{tpu_custom_call.1}
  #allocation0 [shape = 'u32[]', space=smem, size = 0x4, offset = 0x4, fixed_abs, tag = 'smem constant byte address 0x4 - core index']
  #allocation1 [shape = 'u32[144,128]{1,0:T(1,128)}', space=vmem, size = 0x12000, scoped, tag = 'internal scratch']
  #allocation2 [shape = 'f32[32,1]{1,0:T(8,128)}', space=vmem, size = 0x4000, scoped, tag = 'scratch operand']
  %s0 = inlined_call_operand.vmem [shape: f32[2,4,256], index: 0, kind: input, shape index: {}]
  %s1 = inlined_call_operand.vmem [shape: f32[32,4], index: 1, kind: input, shape index: {}]
  %s2 = inlined_call_operand.vmem [shape: f32[32,1], index: 2, kind: input, shape index: {}]
  %s3 = inlined_call_operand.vmem [shape: f32[32,128], index: 3, kind: input, shape index: {}]
  %s4 = inlined_call_operand.vmem [shape: f32[1,128], index: 4, kind: input, shape index: {}]
  %s5 = inlined_call_operand.hbm [shape: f32[2,1,128], index: 5, kind: output, shape index: {}]
  %s6 = sld [smem:[#allocation0]]
  $region61: #{tpu_custom_call.1} parent=0
    _
  %s8 = ssub.s32 1, %s6
  %s9 = scalar_select 0, %s8, %s6
  $region1: #{tpu_custom_call.1} parent=0
    #allocation3 [shape = 'u8[1024]{0}', space=vmem, size = 0x400, scoped, tag = 'output window, operand 0']
    #allocation4 [shape = 's32[2]{0}', space=sflag, size = 0x8, scoped, tag = 'scoped memory for tpu_custom_call.1']
    %10 = vsyncpa [#allocation4], 0
    %s11 = scalar_lea.sflag [#allocation4], 1
    %12 = vsyncpa %s11, 0
    loop: start=0, step=1, limit=6
    $region2: #{tpu_custom_call.1} parent=1 // loop_pre_header
      _
    $region3: #{tpu_custom_call.1} parent=1 // loop_header
      %s14 = sphi 0, %s18
      %p15 = scmp.ge.s32.totalorder %s14, 6
      %s21 = sphi 0, %s33
      %s22 = sphi 0, %s29
      %s23 = sphi 0, %s21
      %s24 = sphi 0, %s22
      %s25 = sphi 0, %s23
      %s26 = sphi 0, %s24
      %s38 = sphi 0, %s40
      %s41 = sphi 0, %s38
      %s42 = sphi 0, %s41
      %s58 = sphi 0, %s42
      %s62 = sphi 0, %s62
      %s64 = sphi 0, %s62
      %s65 = sphi 0, %s64
      %s79 = sphi 0, %s65
      %s83 = sphi 0, %s83
      %s85 = sphi 0, %s83
      %s86 = sphi 0, %s85
      %s100 = sphi 0, %s86
      %s104 = sphi 0, %s104
      %s106 = sphi 0, %s104
      %s107 = sphi 0, %s106
      %s121 = sphi 0, %s107
      %s125 = sphi 0, %s125
      %s127 = sphi 0, %s125
      %s128 = sphi 0, %s127
      %s142 = sphi 0, %s128
      %s148 = sphi 0, %s150
      %s151 = sphi 0, %s148
      %s152 = sphi 0, %s151
      %s168 = sphi 0, %s152
    $region4: #{tpu_custom_call.1} parent=1 // loop_header_branch
      %17 = sbr.rel (%p15) target = $region8
    $region5: #{tpu_custom_call.1} parent=1 // loop_body
      %s19 = ssub.s32 %s14, 1
      %s20 = ssub.s32 %s14, 2
      %s27 = sadd.s32 1, %s22
      %p28 = scmp.ge.s32.totalorder %s27, 2
      %s29 = scalar_select %p28, 0, %s27
      %s30 = sadd.s32 1, %s21
      %s31 = scalar_select %p28, %s30, %s21
      %p32 = scmp.ge.s32.totalorder %s31, 2
      %s33 = scalar_select %p32, 0, %s31
      %s34 = ssub.s32 %s21, %s33
      %s35 = ssub.s32 %s22, %s29
      %s36 = sor.u32 %s34, %s35
      %p37 = scmp.eq.s32.totalorder %s36, 0
      %s39 = sadd.s32 %s38, 1
      %s40 = scalar_select %p37, %s38, %s39
      %p43 = pneg %p37
      %p44 = scmp.eq.s32.totalorder %s14, 3
      %p45 = por %p43, %p44
      %p46 = scmp.ne.s32.totalorder %s38, %s41
      %p47 = scmp.eq.s32.totalorder %s14, 0
      %p48 = por %p46, %p47
      %p49 = scmp.ne.s32.totalorder %s38, %s41
      %p50 = scmp.eq.s32.totalorder %s19, 3
      %p51 = por %p49, %p50
      %p52 = scmp.ne.s32.totalorder %s41, %s42
      %p53 = scmp.eq.s32.totalorder %s19, 0
      %p54 = por %p52, %p53
      %p55 = scmp.ne.s32.totalorder %s41, %s42
      %p56 = scmp.eq.s32.totalorder %s20, 3
      %p57 = por %p55, %p56
      %p59 = scmp.ne.s32.totalorder %s42, %s58
      %p60 = scmp.eq.s32.totalorder %s20, 0
      %p61 = por %p59, %p60
      %s63 = sadd.s32 %s62, 1
      %p66 = scmp.eq.s32.totalorder %s14, 3
      %p67 = scmp.ne.s32.totalorder %s62, %s64
      %p68 = scmp.eq.s32.totalorder %s14, 0
      %p69 = por %p67, %p68
      %p70 = scmp.ne.s32.totalorder %s62, %s64
      %p71 = scmp.eq.s32.totalorder %s19, 3
      %p72 = por %p70, %p71
      %p73 = scmp.ne.s32.totalorder %s64, %s65
      %p74 = scmp.eq.s32.totalorder %s19, 0
      %p75 = por %p73, %p74
      %p76 = scmp.ne.s32.totalorder %s64, %s65
      %p77 = scmp.eq.s32.totalorder %s20, 3
      %p78 = por %p76, %p77
      %p80 = scmp.ne.s32.totalorder %s65, %s79
      %p81 = scmp.eq.s32.totalorder %s20, 0
      %p82 = por %p80, %p81
      %s84 = sadd.s32 %s83, 1
      %p87 = scmp.eq.s32.totalorder %s14, 3
      %p88 = scmp.ne.s32.totalorder %s83, %s85
      %p89 = scmp.eq.s32.totalorder %s14, 0
      %p90 = por %p88, %p89
      %p91 = scmp.ne.s32.totalorder %s83, %s85
      %p92 = scmp.eq.s32.totalorder %s19, 3
      %p93 = por %p91, %p92
      %p94 = scmp.ne.s32.totalorder %s85, %s86
      %p95 = scmp.eq.s32.totalorder %s19, 0
      %p96 = por %p94, %p95
      %p97 = scmp.ne.s32.totalorder %s85, %s86
      %p98 = scmp.eq.s32.totalorder %s20, 3
      %p99 = por %p97, %p98
      %p101 = scmp.ne.s32.totalorder %s86, %s100
      %p102 = scmp.eq.s32.totalorder %s20, 0
      %p103 = por %p101, %p102
      %s105 = sadd.s32 %s104, 1
      %p108 = scmp.eq.s32.totalorder %s14, 3
      %p109 = scmp.ne.s32.totalorder %s104, %s106
      %p110 = scmp.eq.s32.totalorder %s14, 0
      %p111 = por %p109, %p110
      %p112 = scmp.ne.s32.totalorder %s104, %s106
      %p113 = scmp.eq.s32.totalorder %s19, 3
      %p114 = por %p112, %p113
      %p115 = scmp.ne.s32.totalorder %s106, %s107
      %p116 = scmp.eq.s32.totalorder %s19, 0
      %p117 = por %p115, %p116
      %p118 = scmp.ne.s32.totalorder %s106, %s107
      %p119 = scmp.eq.s32.totalorder %s20, 3
      %p120 = por %p118, %p119
      %p122 = scmp.ne.s32.totalorder %s107, %s121
      %p123 = scmp.eq.s32.totalorder %s20, 0
      %p124 = por %p122, %p123
      %s126 = sadd.s32 %s125, 1
      %p129 = scmp.eq.s32.totalorder %s14, 3
      %p130 = scmp.ne.s32.totalorder %s125, %s127
      %p131 = scmp.eq.s32.totalorder %s14, 0
      %p132 = por %p130, %p131
      %p133 = scmp.ne.s32.totalorder %s125, %s127
      %p134 = scmp.eq.s32.totalorder %s19, 3
      %p135 = por %p133, %p134
      %p136 = scmp.ne.s32.totalorder %s127, %s128
      %p137 = scmp.eq.s32.totalorder %s19, 0
      %p138 = por %p136, %p137
      %p139 = scmp.ne.s32.totalorder %s127, %s128
      %p140 = scmp.eq.s32.totalorder %s20, 3
      %p141 = por %p139, %p140
      %p143 = scmp.ne.s32.totalorder %s128, %s142
      %p144 = scmp.eq.s32.totalorder %s20, 0
      %p145 = por %p143, %p144
      %s146 = ssub.s32 %s21, %s33
      %p147 = scmp.eq.s32.totalorder %s146, 0
      %s149 = sadd.s32 %s148, 1
      %s150 = scalar_select %p147, %s148, %s149
      %p153 = pneg %p147
      %p154 = scmp.eq.s32.totalorder %s14, 3
      %p155 = por %p153, %p154
      %p156 = scmp.ne.s32.totalorder %s148, %s151
      %p157 = scmp.eq.s32.totalorder %s14, 0
      %p158 = por %p156, %p157
      %p159 = scmp.ne.s32.totalorder %s148, %s151
      %p160 = scmp.eq.s32.totalorder %s19, 3
      %p161 = por %p159, %p160
      %p162 = scmp.ne.s32.totalorder %s151, %s152
      %p163 = scmp.eq.s32.totalorder %s19, 0
      %p164 = por %p162, %p163
      %p165 = scmp.ne.s32.totalorder %s151, %s152
      %p166 = scmp.eq.s32.totalorder %s20, 3
      %p167 = por %p165, %p166
      %p169 = scmp.ne.s32.totalorder %s152, %s168
      %p170 = scmp.eq.s32.totalorder %s20, 0
      %p171 = por %p169, %p170
      %p172 = scmp.le.s32.totalorder 1, %s14
      %p173 = scmp.lt.s32.totalorder %s14, 5
      %p174 = pnand %p172, %p173
      %p175 = pneg %p174
      // Predicated region
      $region9: #{tpu_custom_call.1} parent=5 // pred_check
        _
      $region10: #{tpu_custom_call.1} parent=5 // pred_check_branch
        %177 = sbr.rel (%p174) target = $region12
      $region11: #{tpu_custom_call.1} parent=5 // pred_region
        %s178 = ssub.s32 %s14, 1
        // Predicated region
        $region13: #{tpu_custom_call.1} parent=11 // pred_check
          %p179 = pneg %p75
        $region14: #{tpu_custom_call.1} parent=11 // pred_check_branch
          %181 = sbr.rel (%p179) target = $region16
        $region15: #{tpu_custom_call.1} parent=11 // pred_region
          _
        $region16: #{tpu_custom_call.1} parent=11 // pred_fallthru
          _
        // Predicated region
        $region17: #{tpu_custom_call.1} parent=11 // pred_check
          %p182 = pneg %p96
        $region18: #{tpu_custom_call.1} parent=11 // pred_check_branch
          %184 = sbr.rel (%p182) target = $region20
        $region19: #{tpu_custom_call.1} parent=11 // pred_region
          _
        $region20: #{tpu_custom_call.1} parent=11 // pred_fallthru
          _
        // Predicated region
        $region21: #{tpu_custom_call.1} parent=11 // pred_check
          %p185 = pneg %p117
        $region22: #{tpu_custom_call.1} parent=11 // pred_check_branch
          %187 = sbr.rel (%p185) target = $region24
        $region23: #{tpu_custom_call.1} parent=11 // pred_region
          _
        $region24: #{tpu_custom_call.1} parent=11 // pred_fallthru
          _
        // Predicated region
        $region25: #{tpu_custom_call.1} parent=11 // pred_check
          %p188 = pneg %p138
        $region26: #{tpu_custom_call.1} parent=11 // pred_check_branch
          %190 = sbr.rel (%p188) target = $region28
        $region27: #{tpu_custom_call.1} parent=11 // pred_region
          _
        $region28: #{tpu_custom_call.1} parent=11 // pred_fallthru
          _
      $region12: #{tpu_custom_call.1} parent=5 // pred_fallthru
        _
      %p191 = scmp.lt.s32.totalorder %s14, 4
      // Predicated region
      $region29: #{tpu_custom_call.1} parent=5 // pred_check
        %p192 = pneg %p191
      $region30: #{tpu_custom_call.1} parent=5 // pred_check_branch
        %194 = sbr.rel (%p192) target = $region32
      $region31: #{tpu_custom_call.1} parent=5 // pred_region
        // Predicated region
        $region33: #{tpu_custom_call.1} parent=31 // pred_check
          %p195 = pneg %p48
        $region34: #{tpu_custom_call.1} parent=31 // pred_check_branch
          %197 = sbr.rel (%p195) target = $region36
        $region35: #{tpu_custom_call.1} parent=31 // pred_region
          %p198 = scmp.lt.s32.totalorder %s21, 1
          %s199 = scalar_select %p198, %s21, 1
          %p200 = scmp.lt.s32.totalorder %s22, 1
          %s201 = scalar_select %p200, %s22, 1
          %s202 = smul.addr %s199, 2
          %s203 = sadd.s32 %s201, %s202
          %s204 = smul.addr %s203, 4
          %s205 = scalar_lea.vmem %s0, %s204
        $region36: #{tpu_custom_call.1} parent=31 // pred_fallthru
          _
      $region32: #{tpu_custom_call.1} parent=5 // pred_fallthru
        _
      %p206 = scmp.le.s32.totalorder 1, %s14
      %p207 = scmp.lt.s32.totalorder %s14, 5
      %p208 = pnand %p206, %p207
      %p209 = pneg %p208
      // Predicated region
      $region37: #{tpu_custom_call.1} parent=5 // pred_check
        _
      $region38: #{tpu_custom_call.1} parent=5 // pred_check_branch
        %211 = sbr.rel (%p208) target = $region40
      $region39: #{tpu_custom_call.1} parent=5 // pred_region
        %s212 = ssub.s32 %s14, 1
        %p213 = scmp.lt.s32.totalorder %s23, 1
        %s214 = scalar_select %p213, %s23, 1
        %p215 = scmp.lt.s32.totalorder %s24, 1
        %s216 = scalar_select %p215, %s24, 1
        %s217 = smul.addr %s214, 2
        %s218 = sadd.s32 %s216, %s217
        %s219 = smul.addr %s218, 4
        %s220 = scalar_lea.vmem %s0, %s219
        %p221 = pneg %p54
        %p222 = pneg %p51
        %p223 = pneg %p75
        %p224 = pneg %p72
        %p225 = pneg %p96
        %p226 = pneg %p93
        %p227 = pneg %p117
        %p228 = pneg %p114
        %p229 = pneg %p138
        %p230 = pneg %p135
        %p231 = pneg %p164
        %p232 = pneg %p161
        %s233 = sand.u32 %s151, 1
        %s234 = scalar_lea.sflag [#allocation4], %s233
        %s235 = sand.u32 %s151, 1
        %s236 = scalar_lea.vmem [#allocation3], %s235
        %p237 = scmp.lt.s32.totalorder %s23, 1
        %s238 = scalar_select %p237, %s23, 1
        %p239 = scmp.lt.s32.totalorder %s24, 1
        %s240 = scalar_select %p239, %s24, 1
        %s241 = smul.addr %s238, 2
        %s242 = sadd.s32 %s240, %s241
        %s243 = smul.addr %s242, 4
        %s244 = scalar_lea.vmem %s0, %s243
        %p245 = scmp.eq.s32.totalorder %s24, 0
        // Predicated region
        $region41: #{tpu_custom_call.1} parent=39 // pred_check
          %p246 = pneg %p245
        $region42: #{tpu_custom_call.1} parent=39 // pred_check_branch
          %248 = sbr.rel (%p246) target = $region44
        $region43: #{tpu_custom_call.1} parent=39 // pred_region
          %vm249 = vcmask 7168
          %250 = vst.msk [vmem:[#allocation2] sm:$0xff] %vm249, 0.0
          %251 = vst.msk [vmem:[#allocation2 + $0x8] sm:$0xff] %vm249, 0.0
          %252 = vst.msk [vmem:[#allocation2 + $0x10] sm:$0xff] %vm249, 0.0
          %253 = vst.msk [vmem:[#allocation2 + $0x18] sm:$0xff] %vm249, 0.0
        $region44: #{tpu_custom_call.1} parent=39 // pred_fallthru
          _
        %v254 = vld [vmem:[%s244] sm:$0xf]
        %v255 = vld [vmem:[%s1] sm:$0xff]
        %v256 = vld [vmem:[%s1 + $0x8] sm:$0xff]
        %v257 = vld [vmem:[%s1 + $0x10] sm:$0xff]
        %v258 = vld [vmem:[%s1 + $0x18] sm:$0xff]
        %v259 = vld [vmem:[%s2] sm:$0xff]
        %v260 = vld [vmem:[%s2 + $0x8] sm:$0xff]
        %v261 = vld [vmem:[%s2 + $0x10] sm:$0xff]
        %v262 = vld [vmem:[%s2 + $0x18] sm:$0xff]
        %264 = vset.pattern.permute.xlu0 0
        %265 = vperm.xlu0 %264, %v259
        %v266 = vpop.permute.xlu0 %265
        %269 = vset.pattern.permute.xlu0 0
        %270 = vperm.xlu0 %269, %v260
        %v271 = vpop.permute.xlu0 %270
        %274 = vset.pattern.permute.xlu0 0
        %275 = vperm.xlu0 %274, %v261
        %v276 = vpop.permute.xlu0 %275
        %279 = vset.pattern.permute.xlu0 0
        %280 = vperm.xlu0 %279, %v262
        %v281 = vpop.permute.xlu0 %280
        %vm283 = vcmask 31744
        %v285 = vsel %vm283, %v255, 0
        %v288 = vsel %vm283, %v256, 0
        %v291 = vsel %vm283, %v257, 0
        %v294 = vsel %vm283, %v258, 0
        %vm296 = vcmask 1043456
        %v298 = vsel %vm296, %v254, 0
        %300 = vmatprep.subr.mxu0 0.0
        %301 = vmatpush1.msra.mxu0 0.0
        %302 = vmatprep.subr.mxu0 0.0
        %303 = vmatpush1.msra.mxu0 0.0
        %304 = vmatprep.subr.mxu0 0.0
        %305 = vmatpush1.msra.mxu0 0.0
        %306 = vmatprep.subr.mxu0 0.0
        %307 = vmatpush1.msra.mxu0 0.0
        %308 = vmatprep.subr.mxu0 0.0
        %309 = vmatpush1.msra.mxu0 0.0
        %310 = vmatprep.subr.mxu0 0.0
        %311 = vmatpush1.msra.mxu0 0.0
        %312 = vmatprep.subr.mxu0 0.0
        %313 = vmatpush1.msra.mxu0 0.0
        %314 = vmatprep.subr.mxu0 0.0
        %315 = vmatpush1.msra.mxu0 0.0
        %316 = vmatprep.subr.mxu0 0.0
        %317 = vmatpush1.msra.mxu0 0.0
        %318 = vmatprep.subr.mxu0 0.0
        %319 = vmatpush1.msra.mxu0 0.0
        %320 = vmatprep.subr.mxu0 0.0
        %321 = vmatpush1.msra.mxu0 0.0
        %322 = vmatprep.subr.mxu0 0.0
        %323 = vmatpush1.msra.mxu0 0.0
        %324 = vmatprep.subr.mxu0 0.0
        %325 = vmatpush1.msra.mxu0 0.0
        %326 = vmatprep.subr.mxu0 0.0
        %327 = vmatpush1.msra.mxu0 0.0
        %328 = vmatprep.subr.mxu0 0.0
        %329 = vmatpush1.msra.mxu0 0.0
        %330 = vmatprep.subr.mxu0 0.0
        %331 = vmatpush1.msra.mxu0 %v298
        %332 = vmatprep.subr.mxu0 0.0
        %333 = vmatpush2.msra.mxu0 0.0
        %334 = vmatprep.subr.mxu0 0.0
        %335 = vmatpush2.msra.mxu0 0.0
        %336 = vmatprep.subr.mxu0 0.0
        %337 = vmatpush2.msra.mxu0 0.0
        %338 = vmatprep.subr.mxu0 0.0
        %339 = vmatpush2.msra.mxu0 0.0
        %340 = vmatprep.subr.mxu0 0.0
        %341 = vmatpush2.msra.mxu0 0.0
        %342 = vmatprep.subr.mxu0 0.0
        %343 = vmatpush2.msra.mxu0 0.0
        %344 = vmatprep.subr.mxu0 0.0
        %345 = vmatpush2.msra.mxu0 0.0
        %346 = vmatprep.subr.mxu0 0.0
        %347 = vmatpush2.msra.mxu0 0.0
        %348 = vmatprep.subr.mxu0 0.0
        %349 = vmatpush2.msra.mxu0 0.0
        %350 = vmatprep.subr.mxu0 0.0
        %351 = vmatpush2.msra.mxu0 0.0
        %352 = vmatprep.subr.mxu0 0.0
        %353 = vmatpush2.msra.mxu0 0.0
        %354 = vmatprep.subr.mxu0 0.0
        %355 = vmatpush2.msra.mxu0 0.0
        %356 = vmatprep.subr.mxu0 0.0
        %357 = vmatpush2.msra.mxu0 0.0
        %358 = vmatprep.subr.mxu0 0.0
        %359 = vmatpush2.msra.mxu0 0.0
        %360 = vmatprep.subr.mxu0 0.0
        %361 = vmatpush2.msra.mxu0 0.0
        %362 = vmatprep.subr.mxu0 0.0
        %363 = vmatpush2.msra.mxu0 0.0
        %364 = vmatprep.mubr.f32.mxu0 0.0
        %365 = vmatmul.mubr.f32.gmra.mxu0 %v285
        %v366 = vpop.f32.mrf.mxu0
        %v367 = vadd.f32 %v266, %v366
        %v368 = vpop.f32.mrf.mxu0
        %369 = vmatprep.mubr.f32.mxu0 0.0
        %370 = vmatmul.mubr.f32.gmra.mxu0 %v288
        %v371 = vpop.f32.mrf.mxu0
        %v372 = vadd.f32 %v271, %v371
        %v373 = vpop.f32.mrf.mxu0
        %374 = vmatprep.mubr.f32.mxu0 0.0
        %375 = vmatmul.mubr.f32.gmra.mxu0 %v291
        %v376 = vpop.f32.mrf.mxu0
        %v377 = vadd.f32 %v276, %v376
        %v378 = vpop.f32.mrf.mxu0
        %379 = vmatprep.mubr.f32.mxu0 0.0
        %380 = vmatmul.mubr.f32.gmra.mxu0 %v294
        %v381 = vpop.f32.mrf.mxu0
        %v382 = vadd.f32 %v281, %v381
        %v383 = vpop.f32.mrf.mxu0
        %384 = vdwg.mxu0
        %v385 = vmax.f32 %v367, 0.0
        %v386 = vmax.f32 %v372, 0.0
        %v387 = vmax.f32 %v377, 0.0
        %v388 = vmax.f32 %v382, 0.0
        %v389 = vld [vmem:[#allocation2] sm:$0xff]
        %v390 = vld [vmem:[#allocation2 + $0x8] sm:$0xff]
        %v391 = vld [vmem:[#allocation2 + $0x10] sm:$0xff]
        %v392 = vld [vmem:[#allocation2 + $0x18] sm:$0xff]
        %393 = vadd.xlane.f32.xlu0 %v385
        %v394 = vpop.xlane.xlu0 %393
        %395 = vadd.xlane.f32.xlu0 %v386
        %v396 = vpop.xlane.xlu0 %395
        %397 = vadd.xlane.f32.xlu0 %v387
        %v398 = vpop.xlane.xlu0 %397
        %399 = vadd.xlane.f32.xlu0 %v388
        %v400 = vpop.xlane.xlu0 %399
        %v401 = vadd.f32 %v389, %v394
        %v402 = vadd.f32 %v390, %v396
        %v403 = vadd.f32 %v391, %v398
        %v404 = vadd.f32 %v392, %v400
        %vm405 = vcmask 7168
        %406 = vst.msk [vmem:[#allocation2] sm:$0xff] %vm405, %v401
        %407 = vst.msk [vmem:[#allocation2 + $0x8] sm:$0xff] %vm405, %v402
        %408 = vst.msk [vmem:[#allocation2 + $0x10] sm:$0xff] %vm405, %v403
        %409 = vst.msk [vmem:[#allocation2 + $0x18] sm:$0xff] %vm405, %v404
        %p410 = scmp.eq.s32.totalorder %s24, 1
        // Predicated region
        $region45: #{tpu_custom_call.1} parent=39 // pred_check
          %p411 = pneg %p410
        $region46: #{tpu_custom_call.1} parent=39 // pred_check_branch
          %413 = sbr.rel (%p411) target = $region48
        $region47: #{tpu_custom_call.1} parent=39 // pred_region
          %v414 = vld [vmem:[#allocation2] sm:$0xff]
          %v415 = vld [vmem:[#allocation2 + $0x8] sm:$0xff]
          %v416 = vld [vmem:[#allocation2 + $0x10] sm:$0xff]
          %v417 = vld [vmem:[#allocation2 + $0x18] sm:$0xff]
          %v418 = vmul.f32 %v414, 0.00390625
          %v419 = vmul.f32 %v415, 0.00390625
          %v420 = vmul.f32 %v416, 0.00390625
          %v421 = vmul.f32 %v417, 0.00390625
          %v422 = vld [vmem:[%s3] sm:$0xff]
          %v423 = vld [vmem:[%s3 + $0x8] sm:$0xff]
          %v424 = vld [vmem:[%s3 + $0x10] sm:$0xff]
          %v425 = vld [vmem:[%s3 + $0x18] sm:$0xff]
          %427 = vset.pattern.permute.xlu0 0
          %428 = vperm.xlu0 %427, %v418
          %v429 = vpop.permute.xlu0 %428
          %432 = vset.pattern.permute.xlu0 0
          %433 = vperm.xlu0 %432, %v419
          %v434 = vpop.permute.xlu0 %433
          %437 = vset.pattern.permute.xlu0 0
          %438 = vperm.xlu0 %437, %v420
          %v439 = vpop.permute.xlu0 %438
          %442 = vset.pattern.permute.xlu0 0
          %443 = vperm.xlu0 %442, %v421
          %v444 = vpop.permute.xlu0 %443
          %v446 = vmul.f32 %v429, %v422
          %v447 = vmul.f32 %v434, %v423
          %v448 = vmul.f32 %v439, %v424
          %v449 = vmul.f32 %v444, %v425
          %v450 = vadd.f32 %v446, %v447
          %v451 = vadd.f32 %v450, %v448
          %v452 = vadd.f32 %v451, %v449
          %v453 = vrot.slane %v452, 4
          %v454 = vadd.f32 %v452, %v453
          %v455 = vrot.slane %v454, 2
          %v456 = vadd.f32 %v454, %v455
          %v457 = vrot.slane %v456, 1
          %v458 = vadd.f32 %v456, %v457
          %v459 = vld [vmem:[%s4] sm:$0x1]
          %v460 = vadd.f32 %v458, %v459
          %461 = vst [vmem:[%s236] sm:$0x1] %v460
        $region48: #{tpu_custom_call.1} parent=39 // pred_fallthru
          _
        %s462 = sand.u32 %s151, 1
        %s463 = scalar_lea.sflag [#allocation4], %s462
        %s464 = sand.u32 %s151, 1
        %s465 = scalar_lea.vmem [#allocation3], %s464
        // Predicated region
        $region49: #{tpu_custom_call.1} parent=39 // pred_check
          %p466 = pneg %p161
        $region50: #{tpu_custom_call.1} parent=39 // pred_check_branch
          %468 = sbr.rel (%p466) target = $region52
        $region51: #{tpu_custom_call.1} parent=39 // pred_region
          %s470 = ssub.s32 16, 16
          %471 = vsyncadd %s463, %s470
          %s472 = smul.addr %s23, 16
          %s473 = scalar_lea.hbm %s5, %s472
          %s475 = sshll.u32 %s465, 4
          %s476 = int_to_ptr.vmem [resolvable:$true] %s475
          %478 = dma.vmem_to_hbm [thread:$0]  %s476, 16, %s473, %s463
        $region52: #{tpu_custom_call.1} parent=39 // pred_fallthru
          _
      $region40: #{tpu_custom_call.1} parent=5 // pred_fallthru
        _
      %p479 = scmp.le.s32.totalorder 2, %s14
      // Predicated region
      $region53: #{tpu_custom_call.1} parent=5 // pred_check
        %p480 = pneg %p479
      $region54: #{tpu_custom_call.1} parent=5 // pred_check_branch
        %482 = sbr.rel (%p480) target = $region56
      $region55: #{tpu_custom_call.1} parent=5 // pred_region
        %s483 = ssub.s32 %s14, 2
        // Predicated region
        $region57: #{tpu_custom_call.1} parent=55 // pred_check
          %p484 = pneg %p167
        $region58: #{tpu_custom_call.1} parent=55 // pred_check_branch
          %486 = sbr.rel (%p484) target = $region60
        $region59: #{tpu_custom_call.1} parent=55 // pred_region
          %s487 = sand.u32 %s152, 1
          %s488 = scalar_lea.sflag [#allocation4], %s487
          %s489 = sand.u32 %s152, 1
          %s490 = scalar_lea.vmem [#allocation3], %s489
          %491 = dma.done %s488, 16
        $region60: #{tpu_custom_call.1} parent=55 // pred_fallthru
          _
      $region56: #{tpu_custom_call.1} parent=5 // pred_fallthru
        _
    $region6: #{tpu_custom_call.1} parent=1 // loop_footer
      %s18 = sadd.s32 1, %s14
    $region7: #{tpu_custom_call.1} parent=1 // loop_footer_branch
      %13 = sbr.rel target = $region3
    $region8: #{tpu_custom_call.1} parent=1 // loop_exit
      _
    %492 = vsyncpa [#allocation4], 1
    %s493 = scalar_lea.sflag [#allocation4], 1
    %494 = vsyncpa %s493, 1

</llo_original>
